<compile_context>
chip_gen: v6e
topology: v6e:2x2x1
jax: 0.10.0
libtpu: 0.0.40
codegen_flags: <defaults>
</compile_context>

<pallas_src>
import functools

import jax
import jax.numpy as jnp
from jax.experimental import pallas as pl
from jax.experimental.pallas import tpu as pltpu


# ----------------------------------------------------------------------------
# Glue: Laplacian precompute (buffer in the PyTorch module, computed at init).
# TODO(synk): the alpha-generalized calculate_laplacian_with_self_loop is not in
# the reference snippet; assuming D^-1/2 (A+I) D^-1/2 for alpha=-0.5 and
# D^-1 (A+I) for alpha=-1.0.
def calculate_laplacian_with_self_loop(adj, alpha):
    n = adj.shape[0]
    a = adj + jnp.eye(n, dtype=adj.dtype)
    d = a.sum(axis=1)
    if alpha == -0.5:
        dinv = jnp.where(d > 0, d ** -0.5, 0.0)
        return a * dinv[None, :] * dinv[:, None]
    dinv = jnp.where(d > 0, d ** alpha, 0.0)
    return dinv[:, None] * a


# ----------------------------------------------------------------------------
# Pallas kernel
def _rtgcn_kernel(B, N, G, lamda,
                  x_ref, hs_ref, l0_ref, l1_ref, whh_ref, w0_ref, b_ref,
                  out_ref):
    BN = B * N

    # hidden halves (zero wrapper copies): hs_ref is the free (B, 2, N, G) view
    hs = hs_ref[...]                               # (B, 2, N, G)
    hm = hs[:, 0].reshape(BN, G)                   # hidden mean, rows = [b, n]
    hv = hs[:, 1].reshape(BN, G)                   # hidden var,  rows = [b, n]
    h2 = jnp.concatenate([hm, hv], axis=1)         # (BN, 2G)

    # Fused mean|var projection in ONE MXU call:
    #   [hm | hv] @ blockdiag(Wm[1:], Wv[1:]) + x * [wim*Wm0 | wiv*Wv0] + [bm | bv]
    c = (jnp.dot(h2, whh_ref[...], preferred_element_type=jnp.float32)
         + x_ref[...] * w0_ref[...] + b_ref[...])  # (BN, 2G)
    cm = c[:, :G]
    cv = c[:, G:]

    nw = jnp.exp(cv * (-lamda))                    # node weights
    pm = cm * nw
    pv = cv * (nw * nw)

    # (BN, G) -> (N, B*G): batch goes to lanes so the graph propagation over N
    # is a single wide matmul per path.  The static loop over B is pure data
    # movement (lane concat), not per-batch matmuls.
    pm_arr = jnp.concatenate(
        [pm[b * N:(b + 1) * N, :] for b in range(B)], axis=1)   # (N, B*G)
    pv_arr = jnp.concatenate(
        [pv[b * N:(b + 1) * N, :] for b in range(B)], axis=1)   # (N, B*G)

    om = jnp.dot(l0_ref[...], pm_arr, preferred_element_type=jnp.float32)  # (N, B*G)
    ov = jnp.dot(l1_ref[...], pv_arr, preferred_element_type=jnp.float32)  # (N, B*G)

    # One lane-dense store: [mean | var] along lanes -> (N, 2*B*G).
    out_ref[...] = jnp.concatenate([om, ov], axis=1)


# ----------------------------------------------------------------------------
# Wrapper
def rtgcn_graph_conv(inputs, hidden_state, params, lap0, lap1, lamda=1.0):
    B, N = inputs.shape
    Wm = params["weights_mean"]
    Wv = params["weights_var"]
    G = Wm.shape[0] - 1
    # The PyTorch forward's reshapes imply output_dim == num_gru_units.
    assert Wm.shape[1] == G and Wv.shape == Wm.shape, \
        "forward semantics require output_dim == num_gru_units"
    assert hidden_state.shape == (B, 2 * N * G)

    wim = params["inputs_weights_mean"][0, 0]
    wiv = params["inputs_weights_var"][0, 0]

    # Block-diagonal fused hidden weights, folded input-scalar row, fused bias.
    zeros = jnp.zeros((G, G), jnp.float32)
    whh = jnp.concatenate(
        [jnp.concatenate([Wm[1:], zeros], axis=1),
         jnp.concatenate([zeros, Wv[1:]], axis=1)], axis=0)         # (2G, 2G)
    w0 = jnp.concatenate([Wm[:1] * wim, Wv[:1] * wiv], axis=1)       # (1, 2G)
    bias = jnp.concatenate(
        [params["biases_mean"], params["biases_var"]]).reshape(1, 2 * G)

    x2 = inputs.reshape(B * N, 1)                     # free reshape
    hs4 = hidden_state.reshape(B, 2, N, G)            # free reshape, no split

    kernel = functools.partial(_rtgcn_kernel, B, N, G, float(lamda))
    vmem = pl.BlockSpec(memory_space=pltpu.MemorySpace.VMEM)

    out = pl.pallas_call(
        kernel,
        out_shape=jax.ShapeDtypeStruct((N, 2 * B * G), jnp.float32),
        in_specs=[vmem] * 7,
        out_specs=vmem,
    )(x2, hs4, lap0, lap1, whh, w0, bias)

    # (N, [mean|var] x B x G) -> (B, N, 2G): layout plumbing outside the kernel.
    return out.reshape(N, 2, B, G).transpose(2, 0, 1, 3).reshape(B, N, 2 * G)


# ----------------------------------------------------------------------------
# Pure-JAX reference mirroring the PyTorch forward exactly (for verification).
def reference_forward(inputs, hidden_state, params, lap0, lap1, lamda):
    B, N = inputs.shape
    G = params["weights_mean"].shape[0] - 1
    hm, hv = jnp.split(hidden_state, 2, axis=-1)
    x = inputs.reshape(B, N, 1)
    input_mean = x * params["inputs_weights_mean"][0, 0]
    input_var = x * params["inputs_weights_var"][0, 0]
    hm = hm.reshape(B, N, G)
    hv = hv.reshape(B, N, G)
    cm = jnp.concatenate([input_mean, hm], axis=2).reshape(B * N, G + 1)
    cv = jnp.concatenate([input_var, hv], axis=2).reshape(B * N, G + 1)
    cm = cm @ params["weights_mean"] + params["biases_mean"]
    cv = cv @ params["weights_var"] + params["biases_var"]
    nw = jnp.exp(-cv * lamda).reshape(B, N, G).transpose(1, 2, 0).reshape(N, G * B)
    cm_ = cm.reshape(B, N, G).transpose(1, 2, 0).reshape(N, G * B)
    cv_ = cv.reshape(B, N, G).transpose(1, 2, 0).reshape(N, G * B)
    om = (lap0 @ (cm_ * nw)).reshape(N, G, B).transpose(2, 0, 1)
    ov = (lap1 @ (cv_ * nw * nw)).reshape(N, G, B).transpose(2, 0, 1)
    return jnp.concatenate([om, ov], axis=-1)


def _xavier_uniform(key, shape):
    fan_in, fan_out = shape[0], shape[1]
    bound = (6.0 / (fan_in + fan_out)) ** 0.5
    return jax.random.uniform(key, shape, jnp.float32, -bound, bound)


if __name__ == "__main__":
    key = jax.random.PRNGKey(0)
    B, N, G = 2, 16, 32          # batch, num_nodes, num_gru_units (== output_dim)
    lamda = 1.0
    bias_init = 0.0

    k_adj, k_wm, k_wv, k_im, k_iv, k_x, k_h = jax.random.split(key, 7)

    # deterministic symmetric 0/1 adjacency, no self loops
    a = jax.random.uniform(k_adj, (N, N)) < 0.3
    adj = jnp.asarray(jnp.logical_or(a, a.T), jnp.float32) * (1.0 - jnp.eye(N))

    lap0 = calculate_laplacian_with_self_loop(adj, -0.5)
    lap1 = calculate_laplacian_with_self_loop(adj, -1.0)

    params = {
        "weights_mean": _xavier_uniform(k_wm, (G + 1, G)),
        "weights_var": _xavier_uniform(k_wv, (G + 1, G)),
        "biases_mean": jnp.full((G,), bias_init, jnp.float32),
        "biases_var": jnp.full((G,), bias_init, jnp.float32),
        "inputs_weights_mean": _xavier_uniform(k_im, (1, 1)),
        "inputs_weights_var": _xavier_uniform(k_iv, (1, 1)),
    }

    inputs = jax.random.normal(k_x, (B, N), jnp.float32)
    hidden_state = jax.random.normal(k_h, (B, 2 * N * G), jnp.float32)

    out = rtgcn_graph_conv(inputs, hidden_state, params, lap0, lap1, lamda)
    out = jax.block_until_ready(out)

    ref = reference_forward(inputs, hidden_state, params, lap0, lap1, lamda)
    assert out.shape == (B, N, 2 * G), out.shape
    assert jnp.allclose(out, ref, atol=1e-4, rtol=1e-4), \
        float(jnp.max(jnp.abs(out - ref)))
    print("KERNEL_OK")
</pallas_src>

<mosaic_0001>
module attributes {stable_mosaic.version = 11 : i64} {
  func.func @_rtgcn_kernel(%arg0: memref<32x1xf32, #tpu.memory_space<vmem>>, %arg1: memref<2x2x16x32xf32, #tpu.memory_space<vmem>>, %arg2: memref<16x16xf32, #tpu.memory_space<vmem>>, %arg3: memref<16x16xf32, #tpu.memory_space<vmem>>, %arg4: memref<64x64xf32, #tpu.memory_space<vmem>>, %arg5: memref<1x64xf32, #tpu.memory_space<vmem>>, %arg6: memref<1x64xf32, #tpu.memory_space<vmem>>, %arg7: memref<16x128xf32, #tpu.memory_space<vmem>>) attributes {dimension_semantics = [], scalar_prefetch = 0 : i64, scratch_operands = 0 : i64, tpu.core_type = #tpu.core_type<tc>} {
    %c0 = arith.constant 0 : index
    %c0_0 = arith.constant 0 : index
    %c0_1 = arith.constant 0 : index
    %c0_2 = arith.constant 0 : index
    %0 = vector.load %arg1[%c0, %c0_0, %c0_1, %c0_2] : memref<2x2x16x32xf32, #tpu.memory_space<vmem>>, vector<2x2x16x32xf32>
    %1 = vector.extract_strided_slice %0 {offsets = [0, 0, 0, 0], sizes = [2, 1, 16, 32], strides = [1, 1, 1, 1]} : vector<2x2x16x32xf32> to vector<2x1x16x32xf32>
    %2 = vector.shape_cast %1 : vector<2x1x16x32xf32> to vector<2x16x32xf32>
    %3 = vector.shape_cast %2 : vector<2x16x32xf32> to vector<32x32xf32>
    %4 = vector.extract_strided_slice %0 {offsets = [0, 1, 0, 0], sizes = [2, 1, 16, 32], strides = [1, 1, 1, 1]} : vector<2x2x16x32xf32> to vector<2x1x16x32xf32>
    %5 = vector.shape_cast %4 : vector<2x1x16x32xf32> to vector<2x16x32xf32>
    %6 = vector.shape_cast %5 : vector<2x16x32xf32> to vector<32x32xf32>
    %7 = tpu.concatenate %3, %6 in 1 : vector<32x32xf32>, vector<32x32xf32> -> vector<32x64xf32>
    %c0_3 = arith.constant 0 : index
    %c0_4 = arith.constant 0 : index
    %8 = vector.load %arg4[%c0_3, %c0_4] : memref<64x64xf32, #tpu.memory_space<vmem>>, vector<64x64xf32>
    %cst = arith.constant dense<0.000000e+00> : vector<32x64xf32>
    %9 = tpu.matmul %7, %8, %cst {dimension_numbers = #tpu.dot_dimension_numbers<[1], [0], [0], [1], [0, 0, 1, 1], [], []>} : vector<32x64xf32>, vector<64x64xf32>, vector<32x64xf32> -> vector<32x64xf32>
    %c0_5 = arith.constant 0 : index
    %c0_6 = arith.constant 0 : index
    %10 = vector.load %arg0[%c0_5, %c0_6] : memref<32x1xf32, #tpu.memory_space<vmem>>, vector<32x1xf32>
    %c0_7 = arith.constant 0 : index
    %c0_8 = arith.constant 0 : index
    %11 = vector.load %arg5[%c0_7, %c0_8] : memref<1x64xf32, #tpu.memory_space<vmem>>, vector<1x64xf32>
    %12 = vector.broadcast %10 : vector<32x1xf32> to vector<32x64xf32>
    %13 = vector.broadcast %11 : vector<1x64xf32> to vector<32x64xf32>
    %14 = arith.mulf %12, %13 : vector<32x64xf32>
    %15 = arith.addf %9, %14 : vector<32x64xf32>
    %c0_9 = arith.constant 0 : index
    %c0_10 = arith.constant 0 : index
    %16 = vector.load %arg6[%c0_9, %c0_10] : memref<1x64xf32, #tpu.memory_space<vmem>>, vector<1x64xf32>
    %17 = vector.broadcast %16 : vector<1x64xf32> to vector<32x64xf32>
    %18 = arith.addf %15, %17 : vector<32x64xf32>
    %19 = vector.extract_strided_slice %18 {offsets = [0, 0], sizes = [32, 32], strides = [1, 1]} : vector<32x64xf32> to vector<32x32xf32>
    %20 = vector.extract_strided_slice %18 {offsets = [0, 32], sizes = [32, 32], strides = [1, 1]} : vector<32x64xf32> to vector<32x32xf32>
    %cst_11 = arith.constant -1.000000e+00 : f32
    %21 = vector.broadcast %cst_11 : f32 to vector<32x32xf32>
    %22 = arith.mulf %20, %21 : vector<32x32xf32>
    %23 = math.exp %22 : vector<32x32xf32>
    %24 = arith.mulf %19, %23 : vector<32x32xf32>
    %25 = arith.mulf %23, %23 : vector<32x32xf32>
    %26 = arith.mulf %20, %25 : vector<32x32xf32>
    %27 = vector.extract_strided_slice %24 {offsets = [0, 0], sizes = [16, 32], strides = [1, 1]} : vector<32x32xf32> to vector<16x32xf32>
    %28 = vector.extract_strided_slice %24 {offsets = [16, 0], sizes = [16, 32], strides = [1, 1]} : vector<32x32xf32> to vector<16x32xf32>
    %29 = tpu.concatenate %27, %28 in 1 : vector<16x32xf32>, vector<16x32xf32> -> vector<16x64xf32>
    %30 = vector.extract_strided_slice %26 {offsets = [0, 0], sizes = [16, 32], strides = [1, 1]} : vector<32x32xf32> to vector<16x32xf32>
    %31 = vector.extract_strided_slice %26 {offsets = [16, 0], sizes = [16, 32], strides = [1, 1]} : vector<32x32xf32> to vector<16x32xf32>
    %32 = tpu.concatenate %30, %31 in 1 : vector<16x32xf32>, vector<16x32xf32> -> vector<16x64xf32>
    %c0_12 = arith.constant 0 : index
    %c0_13 = arith.constant 0 : index
    %33 = vector.load %arg2[%c0_12, %c0_13] : memref<16x16xf32, #tpu.memory_space<vmem>>, vector<16x16xf32>
    %cst_14 = arith.constant dense<0.000000e+00> : vector<16x64xf32>
    %34 = tpu.matmul %33, %29, %cst_14 {dimension_numbers = #tpu.dot_dimension_numbers<[1], [0], [0], [1], [0, 0, 1, 1], [], []>} : vector<16x16xf32>, vector<16x64xf32>, vector<16x64xf32> -> vector<16x64xf32>
    %c0_15 = arith.constant 0 : index
    %c0_16 = arith.constant 0 : index
    %35 = vector.load %arg3[%c0_15, %c0_16] : memref<16x16xf32, #tpu.memory_space<vmem>>, vector<16x16xf32>
    %cst_17 = arith.constant dense<0.000000e+00> : vector<16x64xf32>
    %36 = tpu.matmul %35, %32, %cst_17 {dimension_numbers = #tpu.dot_dimension_numbers<[1], [0], [0], [1], [0, 0, 1, 1], [], []>} : vector<16x16xf32>, vector<16x64xf32>, vector<16x64xf32> -> vector<16x64xf32>
    %37 = tpu.concatenate %34, %36 in 1 : vector<16x64xf32>, vector<16x64xf32> -> vector<16x128xf32>
    %c0_18 = arith.constant 0 : index
    %c0_19 = arith.constant 0 : index
    %38 = vector.load %arg7[%c0_18, %c0_19] : memref<16x128xf32, #tpu.memory_space<vmem>>, vector<16x128xf32>
    tpu.vector_store %arg7[%c0_18, %c0_19], %37 {strides = array<i32>} : memref<16x128xf32, #tpu.memory_space<vmem>>, vector<16x128xf32>,
    return
  }
}

</mosaic_0001>

<llo_original>
// kernel: tpu_custom_call.1
$region0: #{tpu_custom_call.1}
  #allocation0 [shape = 'u32[]', space=smem, size = 0x4, offset = 0x4, fixed_abs, tag = 'smem constant byte address 0x4 - core index']
  #allocation1 [shape = 'u32[144,128]{1,0:T(1,128)}', space=vmem, size = 0x12000, scoped, tag = 'internal scratch']
  %s0 = inlined_call_operand.vmem [shape: f32[32,1], index: 0, kind: input, shape index: {}]
  %s1 = inlined_call_operand.hbm [shape: f32[2,2,16,32], index: 1, kind: input, shape index: {}]
  %s2 = inlined_call_operand.vmem [shape: f32[16,16], index: 2, kind: input, shape index: {}]
  %s3 = inlined_call_operand.vmem [shape: f32[16,16], index: 3, kind: input, shape index: {}]
  %s4 = inlined_call_operand.hbm [shape: f32[64,64], index: 4, kind: input, shape index: {}]
  %s5 = inlined_call_operand.vmem [shape: f32[1,64], index: 5, kind: input, shape index: {}]
  %s6 = inlined_call_operand.vmem [shape: f32[1,64], index: 6, kind: input, shape index: {}]
  %s7 = inlined_call_operand.hbm [shape: f32[16,128], index: 7, kind: output, shape index: {}]
  %s8 = sld [smem:[#allocation0]]
  $region46: #{tpu_custom_call.1} parent=0
    _
  %s10 = ssub.s32 1, %s8
  %s11 = scalar_select 0, %s10, %s8
  $region1: #{tpu_custom_call.1} parent=0
    #allocation2 [shape = 'u8[32768]{0}', space=vmem, size = 0x8000, scoped, tag = 'input window, operand 1, single buffered']
    #allocation3 [shape = 's32[1]{0}', space=sflag, size = 0x4, scoped, tag = 'scoped memory for tpu_custom_call.1']
    #allocation4 [shape = 's32[1]{0}', space=sflag, size = 0x4, scoped, tag = 'scoped memory for tpu_custom_call.1']
    #allocation5 [shape = 'u8[32768]{0}', space=vmem, size = 0x8000, scoped, tag = 'input window, operand 4, single buffered']
    #allocation6 [shape = 's32[1]{0}', space=sflag, size = 0x4, scoped, tag = 'scoped memory for tpu_custom_call.1']
    #allocation7 [shape = 'u8[8192]{0}', space=vmem, size = 0x2000, scoped, tag = 'output window, operand 0, single buffered']
    %12 = vsyncpa [#allocation3], 0
    %13 = vsyncpa [#allocation6], 0
    %14 = vsyncpa [#allocation4], 0
    // Predicated region
    $region2: #{tpu_custom_call.1} parent=1 // pred_check
      _
    $region3: #{tpu_custom_call.1} parent=1 // pred_check_branch
      %16 = sbr.rel (0) target = $region5
    $region4: #{tpu_custom_call.1} parent=1 // pred_region
      _
    $region5: #{tpu_custom_call.1} parent=1 // pred_fallthru
      _
    // Predicated region
    $region6: #{tpu_custom_call.1} parent=1 // pred_check
      _
    $region7: #{tpu_custom_call.1} parent=1 // pred_check_branch
      %18 = sbr.rel (0) target = $region9
    $region8: #{tpu_custom_call.1} parent=1 // pred_region
      %s20 = ssub.s32 1024, 1024
      %21 = vsyncadd [#allocation3], %s20
      %s22 = sshll.u32 [#allocation2], 4
      %s23 = int_to_ptr.vmem [resolvable:$true] %s22
      %28 = dma.hbm_to_vmem [thread:$0]  %s1, 1024, %s23, [#allocation3], 128, 128, 8
    $region9: #{tpu_custom_call.1} parent=1 // pred_fallthru
      _
    // Predicated region
    $region10: #{tpu_custom_call.1} parent=1 // pred_check
      _
    $region11: #{tpu_custom_call.1} parent=1 // pred_check_branch
      %30 = sbr.rel (0) target = $region13
    $region12: #{tpu_custom_call.1} parent=1 // pred_region
      _
    $region13: #{tpu_custom_call.1} parent=1 // pred_fallthru
      _
    // Predicated region
    $region14: #{tpu_custom_call.1} parent=1 // pred_check
      _
    $region15: #{tpu_custom_call.1} parent=1 // pred_check_branch
      %32 = sbr.rel (0) target = $region17
    $region16: #{tpu_custom_call.1} parent=1 // pred_region
      _
    $region17: #{tpu_custom_call.1} parent=1 // pred_fallthru
      _
    // Predicated region
    $region18: #{tpu_custom_call.1} parent=1 // pred_check
      _
    $region19: #{tpu_custom_call.1} parent=1 // pred_check_branch
      %34 = sbr.rel (0) target = $region21
    $region20: #{tpu_custom_call.1} parent=1 // pred_region
      %s36 = ssub.s32 1024, 1024
      %37 = vsyncadd [#allocation6], %s36
      %s38 = sshll.u32 [#allocation5], 4
      %s39 = int_to_ptr.vmem [resolvable:$true] %s38
      %44 = dma.hbm_to_vmem [thread:$0]  %s4, 1024, %s39, [#allocation6], 128, 128, 8
    $region21: #{tpu_custom_call.1} parent=1 // pred_fallthru
      _
    // Predicated region
    $region22: #{tpu_custom_call.1} parent=1 // pred_check
      _
    $region23: #{tpu_custom_call.1} parent=1 // pred_check_branch
      %46 = sbr.rel (0) target = $region25
    $region24: #{tpu_custom_call.1} parent=1 // pred_region
      _
    $region25: #{tpu_custom_call.1} parent=1 // pred_fallthru
      _
    // Predicated region
    $region26: #{tpu_custom_call.1} parent=1 // pred_check
      _
    $region27: #{tpu_custom_call.1} parent=1 // pred_check_branch
      %48 = sbr.rel (0) target = $region29
    $region28: #{tpu_custom_call.1} parent=1 // pred_region
      _
    $region29: #{tpu_custom_call.1} parent=1 // pred_fallthru
      _
    // Predicated region
    $region30: #{tpu_custom_call.1} parent=1 // pred_check
      _
    $region31: #{tpu_custom_call.1} parent=1 // pred_check_branch
      %50 = sbr.rel (0) target = $region33
    $region32: #{tpu_custom_call.1} parent=1 // pred_region
      %51 = dma.done [#allocation3], 1024
    $region33: #{tpu_custom_call.1} parent=1 // pred_fallthru
      _
    // Predicated region
    $region34: #{tpu_custom_call.1} parent=1 // pred_check
      _
    $region35: #{tpu_custom_call.1} parent=1 // pred_check_branch
      %53 = sbr.rel (0) target = $region37
    $region36: #{tpu_custom_call.1} parent=1 // pred_region
      %54 = dma.done [#allocation6], 1024
    $region37: #{tpu_custom_call.1} parent=1 // pred_fallthru
      _
    %v55 = vld [vmem:[#allocation2] sm:$0xff]
    %v56 = vld [vmem:[#allocation2 + $0x8] sm:$0xff]
    %v57 = vld [vmem:[#allocation2 + $0x10] sm:$0xff]
    %v58 = vld [vmem:[#allocation2 + $0x18] sm:$0xff]
    %v59 = vld [vmem:[#allocation2 + $0x20] sm:$0xff]
    %v60 = vld [vmem:[#allocation2 + $0x28] sm:$0xff]
    %v61 = vld [vmem:[#allocation2 + $0x30] sm:$0xff]
    %v62 = vld [vmem:[#allocation2 + $0x38] sm:$0xff]
    %67 = vrot.lane.b32.xlu0 %v57, 32
    %v68 = vpop.permute.xlu0 %67
    %69 = vrot.lane.b32.xlu0 %v58, 32
    %v70 = vpop.permute.xlu0 %69
    %71 = vrot.lane.b32.xlu0 %v61, 32
    %v72 = vpop.permute.xlu0 %71
    %73 = vrot.lane.b32.xlu0 %v62, 32
    %v74 = vpop.permute.xlu0 %73
    %vm79 = vcmask 261120
    %v80 = vsel %vm79, %v55, %v68
    %v81 = vsel %vm79, %v56, %v70
    %v82 = vsel %vm79, %v59, %v72
    %v83 = vsel %vm79, %v60, %v74
    %v84 = vld [vmem:[#allocation5] sm:$0xff]
    %v85 = vld [vmem:[#allocation5 + $0x8] sm:$0xff]
    %v86 = vld [vmem:[#allocation5 + $0x10] sm:$0xff]
    %v87 = vld [vmem:[#allocation5 + $0x18] sm:$0xff]
    %v88 = vld [vmem:[#allocation5 + $0x20] sm:$0xff]
    %v89 = vld [vmem:[#allocation5 + $0x28] sm:$0xff]
    %v90 = vld [vmem:[#allocation5 + $0x30] sm:$0xff]
    %v91 = vld [vmem:[#allocation5 + $0x38] sm:$0xff]
    %v92 = vld [vmem:[%s0] sm:$0xff]
    %v93 = vld [vmem:[%s0 + $0x8] sm:$0xff]
    %v94 = vld [vmem:[%s0 + $0x10] sm:$0xff]
    %v95 = vld [vmem:[%s0 + $0x18] sm:$0xff]
    %v96 = vld [vmem:[%s5] sm:$0x1]
    %98 = vset.pattern.permute.xlu0 0
    %99 = vperm.xlu0 %98, %v92
    %v100 = vpop.permute.xlu0 %99
    %103 = vset.pattern.permute.xlu0 0
    %104 = vperm.xlu0 %103, %v93
    %v105 = vpop.permute.xlu0 %104
    %108 = vset.pattern.permute.xlu0 0
    %109 = vperm.xlu0 %108, %v94
    %v110 = vpop.permute.xlu0 %109
    %113 = vset.pattern.permute.xlu0 0
    %114 = vperm.xlu0 %113, %v95
    %v115 = vpop.permute.xlu0 %114
    %v118 = vlaneseq
    %v119 = vshrl.u32 %v118, 7
    %v120 = vsub.s32 0, %v119
    %v121 = vrot.slane %v96, %v120
    %v123 = vmul.f32 %v100, %v121
    %v124 = vmul.f32 %v105, %v121
    %v125 = vmul.f32 %v110, %v121
    %v126 = vmul.f32 %v115, %v121
    %vm127 = vcmask 523264
    %v129 = vsel %vm127, %v80, 0
    %v132 = vsel %vm127, %v81, 0
    %v135 = vsel %vm127, %v82, 0
    %v138 = vsel %vm127, %v83, 0
    %140 = vmatprep.subr.mxu0 0.0
    %141 = vmatpush1.msra.mxu0 0.0
    %142 = vmatprep.subr.mxu0 0.0
    %143 = vmatpush1.msra.mxu0 0.0
    %144 = vmatprep.subr.mxu0 0.0
    %145 = vmatpush1.msra.mxu0 0.0
    %146 = vmatprep.subr.mxu0 0.0
    %147 = vmatpush1.msra.mxu0 0.0
    %148 = vmatprep.subr.mxu0 0.0
    %149 = vmatpush1.msra.mxu0 0.0
    %150 = vmatprep.subr.mxu0 0.0
    %151 = vmatpush1.msra.mxu0 0.0
    %152 = vmatprep.subr.mxu0 0.0
    %153 = vmatpush1.msra.mxu0 0.0
    %154 = vmatprep.subr.mxu0 0.0
    %155 = vmatpush1.msra.mxu0 0.0
    %156 = vmatprep.subr.mxu0 0.0
    %157 = vmatpush1.msra.mxu0 %v91
    %158 = vmatprep.subr.mxu0 0.0
    %159 = vmatpush1.msra.mxu0 %v90
    %160 = vmatprep.subr.mxu0 0.0
    %161 = vmatpush1.msra.mxu0 %v89
    %162 = vmatprep.subr.mxu0 0.0
    %163 = vmatpush1.msra.mxu0 %v88
    %164 = vmatprep.subr.mxu0 0.0
    %165 = vmatpush1.msra.mxu0 %v87
    %166 = vmatprep.subr.mxu0 0.0
    %167 = vmatpush1.msra.mxu0 %v86
    %168 = vmatprep.subr.mxu0 0.0
    %169 = vmatpush1.msra.mxu0 %v85
    %170 = vmatprep.subr.mxu0 0.0
    %171 = vmatpush1.msra.mxu0 %v84
    %172 = vmatprep.subr.mxu0 0.0
    %173 = vmatpush2.msra.mxu0 0.0
    %174 = vmatprep.subr.mxu0 0.0
    %175 = vmatpush2.msra.mxu0 0.0
    %176 = vmatprep.subr.mxu0 0.0
    %177 = vmatpush2.msra.mxu0 0.0
    %178 = vmatprep.subr.mxu0 0.0
    %179 = vmatpush2.msra.mxu0 0.0
    %180 = vmatprep.subr.mxu0 0.0
    %181 = vmatpush2.msra.mxu0 0.0
    %182 = vmatprep.subr.mxu0 0.0
    %183 = vmatpush2.msra.mxu0 0.0
    %184 = vmatprep.subr.mxu0 0.0
    %185 = vmatpush2.msra.mxu0 0.0
    %186 = vmatprep.subr.mxu0 0.0
    %187 = vmatpush2.msra.mxu0 0.0
    %188 = vmatprep.subr.mxu0 0.0
    %189 = vmatpush2.msra.mxu0 0.0
    %190 = vmatprep.subr.mxu0 0.0
    %191 = vmatpush2.msra.mxu0 0.0
    %192 = vmatprep.subr.mxu0 0.0
    %193 = vmatpush2.msra.mxu0 0.0
    %194 = vmatprep.subr.mxu0 0.0
    %195 = vmatpush2.msra.mxu0 0.0
    %196 = vmatprep.subr.mxu0 0.0
    %197 = vmatpush2.msra.mxu0 0.0
    %198 = vmatprep.subr.mxu0 0.0
    %199 = vmatpush2.msra.mxu0 0.0
    %200 = vmatprep.subr.mxu0 0.0
    %201 = vmatpush2.msra.mxu0 0.0
    %202 = vmatprep.subr.mxu0 0.0
    %203 = vmatpush2.msra.mxu0 0.0
    %204 = vmatprep.mubr.f32.mxu0 0.0
    %205 = vmatmul.mubr.f32.gmra.mxu0 %v129
    %v206 = vpop.f32.mrf.mxu0
    %v207 = vadd.f32 %v123, %v206
    %v208 = vpop.f32.mrf.mxu0
    %209 = vmatprep.mubr.f32.mxu0 0.0
    %210 = vmatmul.mubr.f32.gmra.mxu0 %v132
    %v211 = vpop.f32.mrf.mxu0
    %v212 = vadd.f32 %v124, %v211
    %v213 = vpop.f32.mrf.mxu0
    %214 = vmatprep.mubr.f32.mxu0 0.0
    %215 = vmatmul.mubr.f32.gmra.mxu0 %v135
    %v216 = vpop.f32.mrf.mxu0
    %v217 = vadd.f32 %v125, %v216
    %v218 = vpop.f32.mrf.mxu0
    %219 = vmatprep.mubr.f32.mxu0 0.0
    %220 = vmatmul.mubr.f32.gmra.mxu0 %v138
    %v221 = vpop.f32.mrf.mxu0
    %v222 = vadd.f32 %v126, %v221
    %v223 = vpop.f32.mrf.mxu0
    %224 = vdwg.mxu0
    %v225 = vld [vmem:[%s6] sm:$0x1]
    %v227 = vlaneseq
    %v228 = vshrl.u32 %v227, 7
    %v229 = vsub.s32 0, %v228
    %v230 = vrot.slane %v225, %v229
    %v232 = vadd.f32 %v207, %v230
    %v233 = vadd.f32 %v212, %v230
    %v234 = vadd.f32 %v217, %v230
    %v235 = vadd.f32 %v222, %v230
    %v236 = vmul.f32 %v232, -1.0
    %v237 = vmul.f32 %v233, -1.0
    %v238 = vmul.f32 %v234, -1.0
    %v239 = vmul.f32 %v235, -1.0
    %v240 = vmul.f32 %v236, 1.442695
    %v241 = vpow.pop %v240
    %v242 = vmul.f32 %v237, 1.442695
    %v243 = vpow.pop %v242
    %v244 = vmul.f32 %v238, 1.442695
    %v245 = vpow.pop %v244
    %v246 = vmul.f32 %v239, 1.442695
    %v247 = vpow.pop %v246
    %252 = vrot.lane.b32.xlu0 %v241, 96
    %v253 = vpop.permute.xlu0 %252
    %254 = vrot.lane.b32.xlu0 %v243, 96
    %v255 = vpop.permute.xlu0 %254
    %256 = vrot.lane.b32.xlu0 %v245, 96
    %v257 = vpop.permute.xlu0 %256
    %258 = vrot.lane.b32.xlu0 %v247, 96
    %v259 = vpop.permute.xlu0 %258
    %v264 = vmul.f32 %v232, %v253
    %v265 = vmul.f32 %v233, %v255
    %v266 = vmul.f32 %v234, %v257
    %v267 = vmul.f32 %v235, %v259
    %v268 = vmul.f32 %v241, %v241
    %v269 = vmul.f32 %v243, %v243
    %v270 = vmul.f32 %v245, %v245
    %v271 = vmul.f32 %v247, %v247
    %v272 = vmul.f32 %v232, %v268
    %v273 = vmul.f32 %v233, %v269
    %v274 = vmul.f32 %v234, %v270
    %v275 = vmul.f32 %v235, %v271
    %278 = vrot.lane.b32.xlu0 %v266, 32
    %v279 = vpop.permute.xlu0 %278
    %280 = vrot.lane.b32.xlu0 %v267, 32
    %v281 = vpop.permute.xlu0 %280
    %v284 = vsel %vm79, %v264, %v279
    %v285 = vsel %vm79, %v265, %v281
    %288 = vrot.lane.b32.xlu0 %v272, 96
    %v289 = vpop.permute.xlu0 %288
    %290 = vrot.lane.b32.xlu0 %v273, 96
    %v291 = vpop.permute.xlu0 %290
    %v294 = vsel %vm79, %v289, %v274
    %v295 = vsel %vm79, %v291, %v275
    %v296 = vld [vmem:[%s2] sm:$0xff]
    %v297 = vld [vmem:[%s2 + $0x8] sm:$0xff]
    %vm298 = vcmask 130048
    %v300 = vsel %vm298, %v296, 0
    %v303 = vsel %vm298, %v297, 0
    %305 = vmatprep.subr.mxu0 0.0
    %306 = vmatpush1.msra.mxu0 0.0
    %307 = vmatprep.subr.mxu0 0.0
    %308 = vmatpush1.msra.mxu0 0.0
    %309 = vmatprep.subr.mxu0 0.0
    %310 = vmatpush1.msra.mxu0 0.0
    %311 = vmatprep.subr.mxu0 0.0
    %312 = vmatpush1.msra.mxu0 0.0
    %313 = vmatprep.subr.mxu0 0.0
    %314 = vmatpush1.msra.mxu0 0.0
    %315 = vmatprep.subr.mxu0 0.0
    %316 = vmatpush1.msra.mxu0 0.0
    %317 = vmatprep.subr.mxu0 0.0
    %318 = vmatpush1.msra.mxu0 0.0
    %319 = vmatprep.subr.mxu0 0.0
    %320 = vmatpush1.msra.mxu0 0.0
    %321 = vmatprep.subr.mxu0 0.0
    %322 = vmatpush1.msra.mxu0 0.0
    %323 = vmatprep.subr.mxu0 0.0
    %324 = vmatpush1.msra.mxu0 0.0
    %325 = vmatprep.subr.mxu0 0.0
    %326 = vmatpush1.msra.mxu0 0.0
    %327 = vmatprep.subr.mxu0 0.0
    %328 = vmatpush1.msra.mxu0 0.0
    %329 = vmatprep.subr.mxu0 0.0
    %330 = vmatpush1.msra.mxu0 0.0
    %331 = vmatprep.subr.mxu0 0.0
    %332 = vmatpush1.msra.mxu0 0.0
    %333 = vmatprep.subr.mxu0 0.0
    %334 = vmatpush1.msra.mxu0 %v285
    %335 = vmatprep.subr.mxu0 0.0
    %336 = vmatpush1.msra.mxu0 %v284
    %337 = vmatprep.subr.mxu0 0.0
    %338 = vmatpush2.msra.mxu0 0.0
    %339 = vmatprep.subr.mxu0 0.0
    %340 = vmatpush2.msra.mxu0 0.0
    %341 = vmatprep.subr.mxu0 0.0
    %342 = vmatpush2.msra.mxu0 0.0
    %343 = vmatprep.subr.mxu0 0.0
    %344 = vmatpush2.msra.mxu0 0.0
    %345 = vmatprep.subr.mxu0 0.0
    %346 = vmatpush2.msra.mxu0 0.0
    %347 = vmatprep.subr.mxu0 0.0
    %348 = vmatpush2.msra.mxu0 0.0
    %349 = vmatprep.subr.mxu0 0.0
    %350 = vmatpush2.msra.mxu0 0.0
    %351 = vmatprep.subr.mxu0 0.0
    %352 = vmatpush2.msra.mxu0 0.0
    %353 = vmatprep.subr.mxu0 0.0
    %354 = vmatpush2.msra.mxu0 0.0
    %355 = vmatprep.subr.mxu0 0.0
    %356 = vmatpush2.msra.mxu0 0.0
    %357 = vmatprep.subr.mxu0 0.0
    %358 = vmatpush2.msra.mxu0 0.0
    %359 = vmatprep.subr.mxu0 0.0
    %360 = vmatpush2.msra.mxu0 0.0
    %361 = vmatprep.subr.mxu0 0.0
    %362 = vmatpush2.msra.mxu0 0.0
    %363 = vmatprep.subr.mxu0 0.0
    %364 = vmatpush2.msra.mxu0 0.0
    %365 = vmatprep.subr.mxu0 0.0
    %366 = vmatpush2.msra.mxu0 0.0
    %367 = vmatprep.subr.mxu0 0.0
    %368 = vmatpush2.msra.mxu0 0.0
    %369 = vmatprep.mubr.f32.mxu0 0.0
    %370 = vmatmul.mubr.f32.gmra.mxu0 %v300
    %v371 = vpop.f32.mrf.mxu0
    %v372 = vadd.f32 0.0, %v371
    %v373 = vpop.f32.mrf.mxu0
    %374 = vmatprep.mubr.f32.mxu0 0.0
    %375 = vmatmul.mubr.f32.gmra.mxu0 %v303
    %v376 = vpop.f32.mrf.mxu0
    %v377 = vadd.f32 0.0, %v376
    %v378 = vpop.f32.mrf.mxu0
    %379 = vdwg.mxu0
    %v380 = vld [vmem:[%s3] sm:$0xff]
    %v381 = vld [vmem:[%s3 + $0x8] sm:$0xff]
    %v383 = vsel %vm298, %v380, 0
    %v386 = vsel %vm298, %v381, 0
    %388 = vmatprep.subr.mxu0 0.0
    %389 = vmatpush1.msra.mxu0 0.0
    %390 = vmatprep.subr.mxu0 0.0
    %391 = vmatpush1.msra.mxu0 0.0
    %392 = vmatprep.subr.mxu0 0.0
    %393 = vmatpush1.msra.mxu0 0.0
    %394 = vmatprep.subr.mxu0 0.0
    %395 = vmatpush1.msra.mxu0 0.0
    %396 = vmatprep.subr.mxu0 0.0
    %397 = vmatpush1.msra.mxu0 0.0
    %398 = vmatprep.subr.mxu0 0.0
    %399 = vmatpush1.msra.mxu0 0.0
    %400 = vmatprep.subr.mxu0 0.0
    %401 = vmatpush1.msra.mxu0 0.0
    %402 = vmatprep.subr.mxu0 0.0
    %403 = vmatpush1.msra.mxu0 0.0
    %404 = vmatprep.subr.mxu0 0.0
    %405 = vmatpush1.msra.mxu0 0.0
    %406 = vmatprep.subr.mxu0 0.0
    %407 = vmatpush1.msra.mxu0 0.0
    %408 = vmatprep.subr.mxu0 0.0
    %409 = vmatpush1.msra.mxu0 0.0
    %410 = vmatprep.subr.mxu0 0.0
    %411 = vmatpush1.msra.mxu0 0.0
    %412 = vmatprep.subr.mxu0 0.0
    %413 = vmatpush1.msra.mxu0 0.0
    %414 = vmatprep.subr.mxu0 0.0
    %415 = vmatpush1.msra.mxu0 0.0
    %416 = vmatprep.subr.mxu0 0.0
    %417 = vmatpush1.msra.mxu0 %v295
    %418 = vmatprep.subr.mxu0 0.0
    %419 = vmatpush1.msra.mxu0 %v294
    %420 = vmatprep.subr.mxu0 0.0
    %421 = vmatpush2.msra.mxu0 0.0
    %422 = vmatprep.subr.mxu0 0.0
    %423 = vmatpush2.msra.mxu0 0.0
    %424 = vmatprep.subr.mxu0 0.0
    %425 = vmatpush2.msra.mxu0 0.0
    %426 = vmatprep.subr.mxu0 0.0
    %427 = vmatpush2.msra.mxu0 0.0
    %428 = vmatprep.subr.mxu0 0.0
    %429 = vmatpush2.msra.mxu0 0.0
    %430 = vmatprep.subr.mxu0 0.0
    %431 = vmatpush2.msra.mxu0 0.0
    %432 = vmatprep.subr.mxu0 0.0
    %433 = vmatpush2.msra.mxu0 0.0
    %434 = vmatprep.subr.mxu0 0.0
    %435 = vmatpush2.msra.mxu0 0.0
    %436 = vmatprep.subr.mxu0 0.0
    %437 = vmatpush2.msra.mxu0 0.0
    %438 = vmatprep.subr.mxu0 0.0
    %439 = vmatpush2.msra.mxu0 0.0
    %440 = vmatprep.subr.mxu0 0.0
    %441 = vmatpush2.msra.mxu0 0.0
    %442 = vmatprep.subr.mxu0 0.0
    %443 = vmatpush2.msra.mxu0 0.0
    %444 = vmatprep.subr.mxu0 0.0
    %445 = vmatpush2.msra.mxu0 0.0
    %446 = vmatprep.subr.mxu0 0.0
    %447 = vmatpush2.msra.mxu0 0.0
    %448 = vmatprep.subr.mxu0 0.0
    %449 = vmatpush2.msra.mxu0 0.0
    %450 = vmatprep.subr.mxu0 0.0
    %451 = vmatpush2.msra.mxu0 0.0
    %452 = vmatprep.mubr.f32.mxu0 0.0
    %453 = vmatmul.mubr.f32.gmra.mxu0 %v383
    %v454 = vpop.f32.mrf.mxu0
    %v455 = vadd.f32 0.0, %v454
    %v456 = vpop.f32.mrf.mxu0
    %457 = vmatprep.mubr.f32.mxu0 0.0
    %458 = vmatmul.mubr.f32.gmra.mxu0 %v386
    %v459 = vpop.f32.mrf.mxu0
    %v460 = vadd.f32 0.0, %v459
    %v461 = vpop.f32.mrf.mxu0
    %462 = vdwg.mxu0
    %465 = vrot.lane.b32.xlu0 %v455, 64
    %v466 = vpop.permute.xlu0 %465
    %467 = vrot.lane.b32.xlu0 %v460, 64
    %v468 = vpop.permute.xlu0 %467
    %v471 = vsel %vm127, %v372, %v466
    %v472 = vsel %vm127, %v377, %v468
    %473 = vst [vmem:[#allocation7] sm:$0xff] %v471
    %474 = vst [vmem:[#allocation7 + $0x8] sm:$0xff] %v472
    // Predicated region
    $region38: #{tpu_custom_call.1} parent=1 // pred_check
      _
    $region39: #{tpu_custom_call.1} parent=1 // pred_check_branch
      %476 = sbr.rel (0) target = $region41
    $region40: #{tpu_custom_call.1} parent=1 // pred_region
      %s478 = ssub.s32 256, 256
      %479 = vsyncadd [#allocation4], %s478
      %s480 = sshll.u32 [#allocation7], 4
      %s481 = int_to_ptr.vmem [resolvable:$true] %s480
      %486 = dma.vmem_to_hbm [thread:$0]  %s481, 256, %s7, [#allocation4], 128, 128, 8
    $region41: #{tpu_custom_call.1} parent=1 // pred_fallthru
      _
    // Predicated region
    $region42: #{tpu_custom_call.1} parent=1 // pred_check
      _
    $region43: #{tpu_custom_call.1} parent=1 // pred_check_branch
      %488 = sbr.rel (0) target = $region45
    $region44: #{tpu_custom_call.1} parent=1 // pred_region
      %489 = dma.done [#allocation4], 256
    $region45: #{tpu_custom_call.1} parent=1 // pred_fallthru
      _
    %490 = vsyncpa [#allocation3], 1
    %491 = vsyncpa [#allocation6], 1
    %492 = vsyncpa [#allocation4], 1

</llo_original>
